<compile_context>
chip_gen: v6e
topology: v6e:2x2x1
jax: 0.10.0
libtpu: 0.0.40
codegen_flags: <defaults>
</compile_context>

<pallas_src>
import functools

import jax
import jax.numpy as jnp
import numpy as np
from jax import lax
from jax.experimental import pallas as pl
from jax.experimental.pallas import tpu as pltpu

LANE = 128      # flattened elements map onto (rows, 128): last dim -> lanes
SUBLANE = 16    # row-tile granularity for the tiled path (covers f32 (8) and bf16 (16))


def _confidence_loss_kernel(pd_ref, cp_ref, partial_ref, *, gamma, c0, n, tile_rows):
    """One row tile: build confidence targets, mask the ragged tail, emit a partial sum."""
    i = pl.program_id(0)
    pd = pd_ref[...].astype(jnp.float32)        # (tile_rows, LANE)
    cp = cp_ref[...].astype(jnp.float32)        # (tile_rows, LANE)

    inv_2g = 1.0 / (2.0 * gamma)                # Python constant: mul instead of div
    # Exact PyTorch semantics (second clamp is applied to the already-updated c).
    c = jnp.where(pd <= gamma, 1.0 - pd * inv_2g, pd)
    c = jnp.where(c > gamma, c0, c)

    diff = cp - c

    # Mask everything past the true length n: covers the sub-128 lane pad and the
    # garbage rows of a ragged last tile (Pallas block padding). n is a static const.
    row = lax.broadcasted_iota(jnp.int32, pd.shape, 0)
    col = lax.broadcasted_iota(jnp.int32, pd.shape, 1)
    idx = (i * tile_rows + row) * LANE + col
    diff = jnp.where(idx < n, diff, 0.0)
    sq = diff * diff

    if tile_rows % 8 == 0:
        # Lane-dense partial: fold rows in groups of 8 with VPU adds only; the
        # (8,128) result maps exactly onto full vregs -> unmasked stores.
        partial_ref[...] = jnp.sum(sq.reshape(tile_rows // 8, 8, LANE), axis=0)[None]
    else:
        # Tiny single-tile case (block == full array, rows not a multiple of 8).
        partial_ref[...] = jnp.sum(sq).reshape(1, 1, 1)


def confidence_loss(pocket_dists, confidence_predictions, gamma=4.0, c0=0.001,
                    max_tile_rows=2048):
    """Pallas TPU implementation of ConfidenceLoss.forward."""
    gamma = float(gamma)
    c0 = float(c0)

    pd_flat = jnp.asarray(pocket_dists).reshape(-1)
    cp_flat = jnp.squeeze(jnp.asarray(confidence_predictions)).reshape(-1)
    assert pd_flat.shape == cp_flat.shape, "shapes must match after squeeze (MSELoss)"
    n = int(pd_flat.shape[0])

    # Keep narrow floating dtypes narrow in HBM; upcast happens in-kernel.
    pd_dtype = pd_flat.dtype if jnp.issubdtype(pd_flat.dtype, jnp.floating) else jnp.float32
    cp_dtype = cp_flat.dtype if jnp.issubdtype(cp_flat.dtype, jnp.floating) else jnp.float32
    pd_flat = pd_flat.astype(pd_dtype)
    cp_flat = cp_flat.astype(cp_dtype)

    # Lane-align the flat length. When n % 128 == 0 (typical large workloads) the
    # reshape below is copy-free: a single HBM pass over each input.
    # TODO(synk): for n % 128 != 0 we still pad the final sub-128 tail (one small
    # concatenate); the padded values are irrelevant because the kernel masks by n.
    rem = n % LANE
    if rem:
        pad = LANE - rem
        pd_flat = jnp.concatenate([pd_flat, jnp.zeros((pad,), pd_dtype)])
        cp_flat = jnp.concatenate([cp_flat, jnp.zeros((pad,), cp_dtype)])
    rows = pd_flat.shape[0] // LANE
    pd2 = pd_flat.reshape(rows, LANE)
    cp2 = cp_flat.reshape(rows, LANE)

    # Tiling: no padding to tile multiples — the ragged last tile is handled by Pallas
    # block padding + the in-kernel mask.
    max_tile_rows = max(SUBLANE, (int(max_tile_rows) // SUBLANE) * SUBLANE)
    if rows <= max_tile_rows:
        tile_rows = rows                 # block == full array: always a legal block shape
        num_tiles = 1
    else:
        tile_rows = max_tile_rows        # multiple of 16 -> multiple of 8
        num_tiles = pl.cdiv(rows, tile_rows)

    lane_dense = (tile_rows % 8 == 0)
    if lane_dense:
        out_shape = jax.ShapeDtypeStruct((num_tiles, 8, LANE), jnp.float32)
        out_elems = num_tiles * 8 * LANE
    else:
        out_shape = jax.ShapeDtypeStruct((1, 1, 1), jnp.float32)
        out_elems = 1
    out_spec = pl.BlockSpec(out_shape.shape if num_tiles == 1 else (1,) + out_shape.shape[1:],
                            lambda i: (i, 0, 0))

    partials = pl.pallas_call(
        functools.partial(_confidence_loss_kernel,
                          gamma=gamma, c0=c0, n=n, tile_rows=tile_rows),
        out_shape=out_shape,
        grid_spec=pltpu.PrefetchScalarGridSpec(
            num_scalar_prefetch=0,
            grid=(num_tiles,),
            in_specs=[
                pl.BlockSpec((tile_rows, LANE), lambda i: (i, 0)),
                pl.BlockSpec((tile_rows, LANE), lambda i: (i, 0)),
            ],
            out_specs=out_spec,
        ),
        compiler_params=pltpu.CompilerParams(
            dimension_semantics=("parallel",),
        ),
        cost_estimate=pl.CostEstimate(
            flops=8 * n,
            transcendentals=0,
            bytes_accessed=n * (pd2.dtype.itemsize + cp2.dtype.itemsize) + out_elems * 4,
        ),
    )(pd2, cp2)

    # Finalize in the wrapper: sum partials over tiles, divide by the true N once.
    return jnp.sum(partials) / jnp.float32(n)


def _confidence_loss_ref(pocket_dists, confidence_predictions, gamma=4.0, c0=0.001):
    pd = jnp.asarray(pocket_dists, jnp.float32)
    cp = jnp.squeeze(jnp.asarray(confidence_predictions, jnp.float32))
    c = jnp.where(pd <= gamma, 1.0 - pd / (2.0 * gamma), pd)
    c = jnp.where(c > gamma, c0, c)
    return jnp.mean((cp - c) ** 2)


if __name__ == "__main__":
    key = jax.random.PRNGKey(0)
    k1, k2, k3, k4, k5, k6 = jax.random.split(key, 6)

    # Case 1: small typical shapes — pocket_dists (2, 50), predictions (2, 50, 1).
    pd_a = jax.random.uniform(k1, (2, 50), jnp.float32, 0.0, 8.0)   # spans both sides of gamma=4
    cp_a = jax.random.uniform(k2, (2, 50, 1), jnp.float32, 0.0, 1.0)
    loss_a = confidence_loss(pd_a, cp_a)
    jax.block_until_ready(loss_a)
    np.testing.assert_allclose(np.asarray(loss_a),
                               np.asarray(_confidence_loss_ref(pd_a, cp_a)),
                               rtol=1e-5, atol=1e-6)

    # Case 2: ragged length (3000) + multiple grid tiles + masked last tile.
    pd_b = jax.random.uniform(k3, (3000,), jnp.float32, 0.0, 8.0)
    cp_b = jax.random.uniform(k4, (3000, 1), jnp.float32, 0.0, 1.0)
    loss_b = confidence_loss(pd_b, cp_b, max_tile_rows=16)
    jax.block_until_ready(loss_b)
    np.testing.assert_allclose(np.asarray(loss_b),
                               np.asarray(_confidence_loss_ref(pd_b, cp_b)),
                               rtol=1e-5, atol=1e-6)

    # Case 3: lane-aligned length (48*128) — copy-free reshape path, several full tiles.
    pd_c = jax.random.uniform(k5, (48, 128), jnp.float32, 0.0, 8.0)
    cp_c = jax.random.uniform(k6, (48, 128, 1), jnp.float32, 0.0, 1.0)
    loss_c = confidence_loss(pd_c, cp_c, max_tile_rows=16)
    jax.block_until_ready(loss_c)
    np.testing.assert_allclose(np.asarray(loss_c),
                               np.asarray(_confidence_loss_ref(pd_c, cp_c)),
                               rtol=1e-5, atol=1e-6)

    print("KERNEL_OK")
</pallas_src>

<mosaic_0001>
module attributes {stable_mosaic.version = 11 : i64} {
  func.func @_confidence_loss_kernel(%arg0: i32, %arg1: memref<1x128xf32, #tpu.memory_space<vmem>>, %arg2: memref<1x128xf32, #tpu.memory_space<vmem>>, %arg3: memref<1x1x1xf32, #tpu.memory_space<vmem>>) attributes {dimension_semantics = [#tpu.dimension_semantics<parallel>], iteration_bounds = array<i64: 1>, scalar_prefetch = 0 : i64, scratch_operands = 0 : i64, tpu.core_type = #tpu.core_type<tc>, window_params = [{transform_indices = @transform_0, window_bounds = array<i64: 1, 128>}, {transform_indices = @transform_1, window_bounds = array<i64: 1, 128>}, {transform_indices = @transform_2, window_bounds = array<i64: 1, 1, 1>}]} {
    %c0 = arith.constant 0 : index
    %c0_0 = arith.constant 0 : index
    %0 = vector.load %arg1[%c0, %c0_0] : memref<1x128xf32, #tpu.memory_space<vmem>>, vector<1x128xf32>
    %c0_1 = arith.constant 0 : index
    %c0_2 = arith.constant 0 : index
    %1 = vector.load %arg2[%c0_1, %c0_2] : memref<1x128xf32, #tpu.memory_space<vmem>>, vector<1x128xf32>
    %cst = arith.constant 4.000000e+00 : f32
    %2 = vector.broadcast %cst : f32 to vector<1x128xf32>
    %3 = arith.cmpf ole, %0, %2 : vector<1x128xf32>
    %cst_3 = arith.constant 1.250000e-01 : f32
    %4 = vector.broadcast %cst_3 : f32 to vector<1x128xf32>
    %5 = arith.mulf %0, %4 : vector<1x128xf32>
    %cst_4 = arith.constant 1.000000e+00 : f32
    %6 = vector.broadcast %cst_4 : f32 to vector<1x128xf32>
    %7 = arith.subf %6, %5 : vector<1x128xf32>
    %8 = arith.select %3, %7, %0 : vector<1x128xi1>, vector<1x128xf32>
    %cst_5 = arith.constant 4.000000e+00 : f32
    %9 = vector.broadcast %cst_5 : f32 to vector<1x128xf32>
    %10 = arith.cmpf ogt, %8, %9 : vector<1x128xf32>
    %cst_6 = arith.constant 1.000000e-03 : f32
    %11 = vector.broadcast %cst_6 : f32 to vector<1x128xf32>
    %12 = arith.select %10, %11, %8 : vector<1x128xi1>, vector<1x128xf32>
    %13 = arith.subf %1, %12 : vector<1x128xf32>
    %14 = tpu.iota {dimensions = array<i32: 0>} : vector<1x128xi32>
    %15 = tpu.iota {dimensions = array<i32: 1>} : vector<1x128xi32>
    %c1_i32 = arith.constant 1 : i32
    %16 = arith.muli %arg0, %c1_i32 : i32
    %17 = vector.broadcast %16 : i32 to vector<1x128xi32>
    %18 = arith.addi %17, %14 : vector<1x128xi32>
    %c128_i32 = arith.constant 128 : i32
    %19 = vector.broadcast %c128_i32 : i32 to vector<1x128xi32>
    %20 = arith.muli %18, %19 : vector<1x128xi32>
    %21 = arith.addi %20, %15 : vector<1x128xi32>
    %c100_i32 = arith.constant 100 : i32
    %22 = vector.broadcast %c100_i32 : i32 to vector<1x128xi32>
    %23 = arith.cmpi slt, %21, %22 : vector<1x128xi32>
    %cst_7 = arith.constant 0.000000e+00 : f32
    %24 = vector.broadcast %cst_7 : f32 to vector<1x128xf32>
    %25 = arith.select %23, %13, %24 : vector<1x128xi1>, vector<1x128xf32>
    %26 = arith.mulf %25, %25 : vector<1x128xf32>
    %27 = vector.shape_cast %26 : vector<1x128xf32> to vector<1x1x128xf32>
    %cst_8 = arith.constant dense<0.000000e+00> : vector<1xf32>
    %28 = vector.multi_reduction <add>, %27, %cst_8 [1, 2] : vector<1x1x128xf32> to vector<1xf32>
    %29 = vector.shape_cast %28 : vector<1xf32> to vector<1x1x1xf32>
    %30 = vector.extract %29[0, 0, 0] : f32 from vector<1x1x1xf32>
    %31 = vector.broadcast %30 : f32 to vector<1x1x1xf32>
    %c0_9 = arith.constant 0 : index
    %c0_10 = arith.constant 0 : index
    %c0_11 = arith.constant 0 : index
    %32 = vector.load %arg3[%c0_9, %c0_10, %c0_11] : memref<1x1x1xf32, #tpu.memory_space<vmem>>, vector<1x1x1xf32>
    tpu.vector_store %arg3[%c0_9, %c0_10, %c0_11], %31 {strides = array<i32>} : memref<1x1x1xf32, #tpu.memory_space<vmem>>, vector<1x1x1xf32>,
    return
  }
  func.func @transform_0(%arg0: i32) -> (i32, i32) {
    %c0_i32 = arith.constant 0 : i32
    %c0_i32_0 = arith.constant 0 : i32
    return %arg0, %c0_i32 : i32, i32
  }
  func.func @transform_1(%arg0: i32) -> (i32, i32) {
    %c0_i32 = arith.constant 0 : i32
    %c0_i32_0 = arith.constant 0 : i32
    return %arg0, %c0_i32 : i32, i32
  }
  func.func @transform_2(%arg0: i32) -> (i32, i32, i32) {
    %c0_i32 = arith.constant 0 : i32
    %c0_i32_0 = arith.constant 0 : i32
    %c0_i32_1 = arith.constant 0 : i32
    return %arg0, %c0_i32, %c0_i32_0 : i32, i32, i32
  }
}

</mosaic_0001>

<llo_original>
// kernel: tpu_custom_call.1
$region0: #{tpu_custom_call.1}
  #allocation0 [shape = 'u32[]', space=smem, size = 0x4, offset = 0x4, fixed_abs, tag = 'smem constant byte address 0x4 - core index']
  #allocation1 [shape = 'u32[144,128]{1,0:T(1,128)}', space=vmem, size = 0x12000, scoped, tag = 'internal scratch']
  %s0 = inlined_call_operand.hbm [shape: f32[1,128], index: 0, kind: input, shape index: {}]
  %s1 = inlined_call_operand.vmem [shape: f32[1,128], index: 1, kind: input, shape index: {}]
  %s2 = inlined_call_operand.hbm [shape: f32[1,1,1], index: 2, kind: output, shape index: {}]
  %s3 = sld [smem:[#allocation0]]
  $region22: #{tpu_custom_call.1} parent=0
    _
  %s5 = ssub.s32 1, %s3
  %s6 = scalar_select 0, %s5, %s3
  $region1: #{tpu_custom_call.1} parent=0
    #allocation2 [shape = 'u8[512]{0}', space=vmem, size = 0x400, scoped, tag = 'input window, operand 0, single buffered']
    #allocation3 [shape = 's32[1]{0}', space=sflag, size = 0x4, scoped, tag = 'scoped memory for tpu_custom_call.1']
    #allocation4 [shape = 's32[1]{0}', space=sflag, size = 0x4, scoped, tag = 'scoped memory for tpu_custom_call.1']
    #allocation5 [shape = 'u8[512]{0}', space=vmem, size = 0x400, scoped, tag = 'output window, operand 0, single buffered']
    %7 = vsyncpa [#allocation3], 0
    %8 = vsyncpa [#allocation4], 0
    // Predicated region
    $region2: #{tpu_custom_call.1} parent=1 // pred_check
      _
    $region3: #{tpu_custom_call.1} parent=1 // pred_check_branch
      %10 = sbr.rel (0) target = $region5
    $region4: #{tpu_custom_call.1} parent=1 // pred_region
      %s12 = ssub.s32 16, 16
      %13 = vsyncadd [#allocation3], %s12
      %s15 = sshll.u32 [#allocation2], 4
      %s16 = int_to_ptr.vmem [resolvable:$true] %s15
      %18 = dma.hbm_to_vmem [thread:$0]  %s0, 16, %s16, [#allocation3]
    $region5: #{tpu_custom_call.1} parent=1 // pred_fallthru
      _
    // Predicated region
    $region6: #{tpu_custom_call.1} parent=1 // pred_check
      _
    $region7: #{tpu_custom_call.1} parent=1 // pred_check_branch
      %20 = sbr.rel (0) target = $region9
    $region8: #{tpu_custom_call.1} parent=1 // pred_region
      _
    $region9: #{tpu_custom_call.1} parent=1 // pred_fallthru
      _
    // Predicated region
    $region10: #{tpu_custom_call.1} parent=1 // pred_check
      _
    $region11: #{tpu_custom_call.1} parent=1 // pred_check_branch
      %22 = sbr.rel (0) target = $region13
    $region12: #{tpu_custom_call.1} parent=1 // pred_region
      %23 = dma.done [#allocation3], 16
    $region13: #{tpu_custom_call.1} parent=1 // pred_fallthru
      _
    %v24 = vld [vmem:[#allocation2] sm:$0x1]
    %v25 = vld [vmem:[%s1] sm:$0x1]
    %vm26 = vcmp.le.f32.partialorder %v24, 4.0
    %v27 = vmul.f32 %v24, 0.125
    %v28 = vsub.f32 1.0, %v27
    %v29 = vsel %vm26, %v28, %v24
    %vm30 = vcmp.gt.f32.partialorder %v29, 4.0
    %v31 = vsel %vm30, 0.001, %v29
    %v32 = vsub.f32 %v25, %v31
    %v33 = vlaneseq
    %v34 = vshrl.u32 %v33, 7
    %v35 = vlaneseq
    %v36 = vand.u32 %v35, 127
    %v37 = vstv 0
    %v38 = vadd.s32 %v37, %v34
    %v39 = vmul.u32 %v38, 128
    %v40 = vadd.s32 %v39, %v36
    %vm41 = vcmp.lt.s32.totalorder %v40, 100
    %v42 = vsel %vm41, %v32, 0.0
    %v43 = vmul.f32 %v42, %v42
    %vm44 = vcmask 1040384
    %v45 = vsel %vm44, %v43, 0.0
    %46 = vadd.xlane.f32.xlu0 %v45
    %v47 = vpop.xlane.xlu0 %46
    %v48 = vrot.slane %v47, 4
    %v49 = vadd.f32 %v47, %v48
    %v50 = vrot.slane %v49, 2
    %v51 = vadd.f32 %v49, %v50
    %v52 = vrot.slane %v51, 1
    %v53 = vadd.f32 %v51, %v52
    %s54 = vtos %v53
    %v55 = vstv %s54
    %vm56 = vcmask 0
    %57 = vst.msk [vmem:[#allocation5] sm:$0x1] %vm56, %v55
    // Predicated region
    $region14: #{tpu_custom_call.1} parent=1 // pred_check
      _
    $region15: #{tpu_custom_call.1} parent=1 // pred_check_branch
      %59 = sbr.rel (0) target = $region17
    $region16: #{tpu_custom_call.1} parent=1 // pred_region
      %s61 = ssub.s32 16, 16
      %62 = vsyncadd [#allocation4], %s61
      %s64 = sshll.u32 [#allocation5], 4
      %s65 = int_to_ptr.vmem [resolvable:$true] %s64
      %67 = dma.vmem_to_hbm [thread:$0]  %s65, 16, %s2, [#allocation4]
    $region17: #{tpu_custom_call.1} parent=1 // pred_fallthru
      _
    // Predicated region
    $region18: #{tpu_custom_call.1} parent=1 // pred_check
      _
    $region19: #{tpu_custom_call.1} parent=1 // pred_check_branch
      %69 = sbr.rel (0) target = $region21
    $region20: #{tpu_custom_call.1} parent=1 // pred_region
      %70 = dma.done [#allocation4], 16
    $region21: #{tpu_custom_call.1} parent=1 // pred_fallthru
      _
    %71 = vsyncpa [#allocation3], 1
    %72 = vsyncpa [#allocation4], 1

</llo_original>
